<compile_context>
chip_gen: v5e
topology: v5e:2x2
jax: 0.10.0
libtpu: 0.0.40
codegen_flags: <defaults>
</compile_context>

<pallas_src>
import jax
import jax.numpy as jnp
from jax.experimental import pallas as pl
from jax.experimental.pallas import tpu as pltpu


def mlp_kernel(scale_ref, x_ref, w1_ref, b1_ref, w2_ref, b2_ref, w3_ref, b3_ref, o_ref):
    # x tile: [TILE_M, obs_dim] f32; weights bf16 [in, out]; biases f32 [1, out]
    x = x_ref[...]

    # Layer 1: Linear(obs_dim, 256) + ReLU   (bf16 MXU operands, f32 accum)
    h1 = jnp.dot(x.astype(jnp.bfloat16), w1_ref[...],
                 preferred_element_type=jnp.float32) + b1_ref[...]
    h1 = jnp.maximum(h1, 0.0)

    # Layer 2: Linear(256, 256) + ReLU
    h2 = jnp.dot(h1.astype(jnp.bfloat16), w2_ref[...],
                 preferred_element_type=jnp.float32) + b2_ref[...]
    h2 = jnp.maximum(h2, 0.0)

    # Layer 3: Linear(256, acao_dim) + Tanh, then scale by acao_limite (SMEM scalar)
    y = jnp.dot(h2.astype(jnp.bfloat16), w3_ref[...],
                preferred_element_type=jnp.float32) + b3_ref[...]
    o_ref[...] = jnp.tanh(y) * scale_ref[0, 0]


def _round_up(x, m):
    return ((x + m - 1) // m) * m


# Large batch tile: amortizes the ~0.35 us per-grid-step pipeline overhead.
# VMEM footprint at 1024 rows (obs/out double buffers + resident bf16 weights
# + f32/bf16 intermediates) is ~4 MB -- far inside the 32 MiB scoped limit on
# every generation, including v7x's 64 MiB physical VMEM.
_PREFERRED_TILE_M = 1024


def _num_tensorcores():
    try:
        kind = jax.devices()[0].device_kind.lower()
    except Exception:
        return 1
    return 2 if "v7" in kind else 1


def _pick_tile_m(B):
    tile = min(_PREFERRED_TILE_M, _round_up(B, 8))
    # v7x (2 TCs): keep the grid at >= 2 steps so the "parallel" batch axis
    # actually shards across both TensorCores.
    if _num_tensorcores() >= 2 and pl.cdiv(B, tile) == 1 and B >= 16:
        tile = _round_up(pl.cdiv(B, 2), 8)
    return tile


def atuador_forward(obs, kernel_params, acao_limite, tile_m=None):
    """obs: [B, obs_dim] f32.  kernel_params: bf16 weights [in,out] + f32 biases
    (from prepare_inference_params), so no dtype conversion happens per call."""
    B, obs_dim = obs.shape
    w1, b1 = kernel_params["w1"], kernel_params["b1"]
    w2, b2 = kernel_params["w2"], kernel_params["b2"]
    w3, b3 = kernel_params["w3"], kernel_params["b3"]
    hidden = w1.shape[1]
    acao_dim = w3.shape[1]

    if tile_m is None:
        tile_m = _pick_tile_m(B)

    grid = (pl.cdiv(B, tile_m),)
    const = lambda i: (0, 0)  # weights/biases resident across the batch grid

    scale = jnp.full((1, 1), acao_limite, dtype=jnp.float32)

    flops = 2 * B * (obs_dim * hidden + hidden * hidden + hidden * acao_dim)
    bytes_accessed = (
        B * (obs_dim + acao_dim) * 4                                   # obs in, out
        + (obs_dim * hidden + hidden * hidden + hidden * acao_dim) * 2  # bf16 weights
        + (2 * hidden + acao_dim) * 4                                   # f32 biases
    )

    out = pl.pallas_call(
        mlp_kernel,
        out_shape=jax.ShapeDtypeStruct((B, acao_dim), jnp.float32),
        grid=grid,
        in_specs=[
            pl.BlockSpec(memory_space=pltpu.MemorySpace.SMEM),  # acao_limite scalar
            pl.BlockSpec((tile_m, obs_dim), lambda i: (i, 0)),  # obs tile (streamed)
            pl.BlockSpec((obs_dim, hidden), const),             # w1 (resident)
            pl.BlockSpec((1, hidden), const),                   # b1
            pl.BlockSpec((hidden, hidden), const),              # w2
            pl.BlockSpec((1, hidden), const),                   # b2
            pl.BlockSpec((hidden, acao_dim), const),            # w3
            pl.BlockSpec((1, acao_dim), const),                 # b3
        ],
        out_specs=pl.BlockSpec((tile_m, acao_dim), lambda i: (i, 0)),
        compiler_params=pltpu.CompilerParams(
            dimension_semantics=("parallel",),
            vmem_limit_bytes=32 * 1024 * 1024,
        ),
        cost_estimate=pl.CostEstimate(
            flops=flops,
            transcendentals=B * acao_dim,
            bytes_accessed=bytes_accessed,
        ),
    )(scale, obs, w1, b1, w2, b2, w3, b3)

    return out


def init_params(key, obs_dim, acao_dim, hidden=256):
    """f32 master params mirroring PyTorch nn.Linear default init:
    U(-1/sqrt(fan_in), 1/sqrt(fan_in)) for weights and biases.
    Weights stored [in, out] (transpose of nn.Linear) so the kernel is x @ W + b."""
    ks = jax.random.split(key, 6)

    def linear(kw, kb, fan_in, fan_out):
        bound = 1.0 / jnp.sqrt(fan_in)
        w = jax.random.uniform(kw, (fan_in, fan_out), jnp.float32, -bound, bound)
        b = jax.random.uniform(kb, (1, fan_out), jnp.float32, -bound, bound)
        return w, b

    w1, b1 = linear(ks[0], ks[1], obs_dim, hidden)
    w2, b2 = linear(ks[2], ks[3], hidden, hidden)
    w3, b3 = linear(ks[4], ks[5], hidden, acao_dim)
    return dict(w1=w1, b1=b1, w2=w2, b2=b2, w3=w3, b3=b3)


def prepare_inference_params(params):
    """One-time bf16 cast of the weights, done OUTSIDE the per-call hot path.
    Biases stay f32 (bias add / ReLU / tanh run in f32 on the VPU/EUP)."""
    return dict(
        w1=params["w1"].astype(jnp.bfloat16), b1=params["b1"],
        w2=params["w2"].astype(jnp.bfloat16), b2=params["b2"],
        w3=params["w3"].astype(jnp.bfloat16), b3=params["b3"],
    )


def reference_forward(obs, params, acao_limite):
    """Pure-JAX reference mirroring the kernel's bf16-operand / f32-accum math."""
    def dot_bf16(a, w):
        return jnp.dot(a.astype(jnp.bfloat16), w.astype(jnp.bfloat16),
                       preferred_element_type=jnp.float32)

    h1 = jnp.maximum(dot_bf16(obs, params["w1"]) + params["b1"], 0.0)
    h2 = jnp.maximum(dot_bf16(h1, params["w2"]) + params["b2"], 0.0)
    y = dot_bf16(h2, params["w3"]) + params["b3"]
    return jnp.tanh(y) * acao_limite


if __name__ == "__main__":
    obs_dim, acao_dim, acao_limite = 32, 4, 2.0

    key = jax.random.PRNGKey(0)
    k_params, k_obs1, k_obs2 = jax.random.split(key, 3)
    params = init_params(k_params, obs_dim, acao_dim)
    kernel_params = prepare_inference_params(params)   # bf16 cast once, off hot path

    # Small batch: single small grid step (tile capped at 8-aligned batch).
    B_small = 8
    obs_small = jax.random.normal(k_obs1, (B_small, obs_dim), dtype=jnp.float32)
    out_small = jax.block_until_ready(atuador_forward(obs_small, kernel_params, acao_limite))
    ref_small = reference_forward(obs_small, params, acao_limite)
    assert out_small.shape == (B_small, acao_dim)
    assert jnp.allclose(out_small, ref_small, atol=1e-3, rtol=1e-3), "mismatch (small batch)"

    # Larger, non-8/non-tile-multiple batch: exercises the masked ragged
    # boundary block (no pad / no output slice in the wrapper).
    B_big = 300
    obs_big = jax.random.normal(k_obs2, (B_big, obs_dim), dtype=jnp.float32)
    out_big = jax.block_until_ready(atuador_forward(obs_big, kernel_params, acao_limite))
    ref_big = reference_forward(obs_big, params, acao_limite)
    assert out_big.shape == (B_big, acao_dim)
    assert jnp.allclose(out_big, ref_big, atol=1e-3, rtol=1e-3), "mismatch (large batch)"

    print("KERNEL_OK")
</pallas_src>

<mosaic_0001>
module attributes {stable_mosaic.version = 11 : i64} {
  func.func @mlp_kernel(%arg0: i32, %arg1: memref<1x1xf32, #tpu.memory_space<smem>>, %arg2: memref<8x32xf32, #tpu.memory_space<vmem>>, %arg3: memref<32x256xbf16, #tpu.memory_space<vmem>>, %arg4: memref<1x256xf32, #tpu.memory_space<vmem>>, %arg5: memref<256x256xbf16, #tpu.memory_space<vmem>>, %arg6: memref<1x256xf32, #tpu.memory_space<vmem>>, %arg7: memref<256x4xbf16, #tpu.memory_space<vmem>>, %arg8: memref<1x4xf32, #tpu.memory_space<vmem>>, %arg9: memref<8x4xf32, #tpu.memory_space<vmem>>) attributes {dimension_semantics = [#tpu.dimension_semantics<parallel>], iteration_bounds = array<i64: 1>, scalar_prefetch = 0 : i64, scratch_operands = 0 : i64, tpu.core_type = #tpu.core_type<tc>, window_params = [{transform_indices = @transform_0, window_bounds = array<i64: 1, 1>}, {transform_indices = @transform_1, window_bounds = array<i64: 8, 32>}, {pipeline_mode = #tpu.pipeline_mode<synchronous>, transform_indices = @transform_2, window_bounds = array<i64: 32, 256>}, {pipeline_mode = #tpu.pipeline_mode<synchronous>, transform_indices = @transform_3, window_bounds = array<i64: 1, 256>}, {pipeline_mode = #tpu.pipeline_mode<synchronous>, transform_indices = @transform_4, window_bounds = array<i64: 256, 256>}, {pipeline_mode = #tpu.pipeline_mode<synchronous>, transform_indices = @transform_5, window_bounds = array<i64: 1, 256>}, {pipeline_mode = #tpu.pipeline_mode<synchronous>, transform_indices = @transform_6, window_bounds = array<i64: 256, 4>}, {pipeline_mode = #tpu.pipeline_mode<synchronous>, transform_indices = @transform_7, window_bounds = array<i64: 1, 4>}, {transform_indices = @transform_8, window_bounds = array<i64: 8, 4>}]} {
    %c0 = arith.constant 0 : index
    %c0_0 = arith.constant 0 : index
    %0 = vector.load %arg2[%c0, %c0_0] : memref<8x32xf32, #tpu.memory_space<vmem>>, vector<8x32xf32>
    %1 = arith.truncf %0 : vector<8x32xf32> to vector<8x32xbf16>
    %c0_1 = arith.constant 0 : index
    %c0_2 = arith.constant 0 : index
    %2 = vector.load %arg3[%c0_1, %c0_2] : memref<32x256xbf16, #tpu.memory_space<vmem>>, vector<32x256xbf16>
    %cst = arith.constant dense<0.000000e+00> : vector<8x256xf32>
    %3 = tpu.matmul %1, %2, %cst {dimension_numbers = #tpu.dot_dimension_numbers<[1], [0], [0], [1], [0, 0, 1, 1], [], []>} : vector<8x32xbf16>, vector<32x256xbf16>, vector<8x256xf32> -> vector<8x256xf32>
    %c0_3 = arith.constant 0 : index
    %c0_4 = arith.constant 0 : index
    %4 = vector.load %arg4[%c0_3, %c0_4] : memref<1x256xf32, #tpu.memory_space<vmem>>, vector<1x256xf32>
    %5 = vector.broadcast %4 : vector<1x256xf32> to vector<8x256xf32>
    %6 = arith.addf %3, %5 : vector<8x256xf32>
    %cst_5 = arith.constant 0.000000e+00 : f32
    %7 = vector.broadcast %cst_5 : f32 to vector<8x256xf32>
    %8 = arith.maximumf %6, %7 : vector<8x256xf32>
    %9 = arith.truncf %8 : vector<8x256xf32> to vector<8x256xbf16>
    %c0_6 = arith.constant 0 : index
    %c0_7 = arith.constant 0 : index
    %10 = vector.load %arg5[%c0_6, %c0_7] : memref<256x256xbf16, #tpu.memory_space<vmem>>, vector<256x256xbf16>
    %cst_8 = arith.constant dense<0.000000e+00> : vector<8x256xf32>
    %11 = tpu.matmul %9, %10, %cst_8 {dimension_numbers = #tpu.dot_dimension_numbers<[1], [0], [0], [1], [0, 0, 1, 1], [], []>} : vector<8x256xbf16>, vector<256x256xbf16>, vector<8x256xf32> -> vector<8x256xf32>
    %c0_9 = arith.constant 0 : index
    %c0_10 = arith.constant 0 : index
    %12 = vector.load %arg6[%c0_9, %c0_10] : memref<1x256xf32, #tpu.memory_space<vmem>>, vector<1x256xf32>
    %13 = vector.broadcast %12 : vector<1x256xf32> to vector<8x256xf32>
    %14 = arith.addf %11, %13 : vector<8x256xf32>
    %cst_11 = arith.constant 0.000000e+00 : f32
    %15 = vector.broadcast %cst_11 : f32 to vector<8x256xf32>
    %16 = arith.maximumf %14, %15 : vector<8x256xf32>
    %17 = arith.truncf %16 : vector<8x256xf32> to vector<8x256xbf16>
    %c0_12 = arith.constant 0 : index
    %c0_13 = arith.constant 0 : index
    %18 = vector.load %arg7[%c0_12, %c0_13] : memref<256x4xbf16, #tpu.memory_space<vmem>>, vector<256x4xbf16>
    %cst_14 = arith.constant dense<0.000000e+00> : vector<8x4xf32>
    %19 = tpu.matmul %17, %18, %cst_14 {dimension_numbers = #tpu.dot_dimension_numbers<[1], [0], [0], [1], [0, 0, 1, 1], [], []>} : vector<8x256xbf16>, vector<256x4xbf16>, vector<8x4xf32> -> vector<8x4xf32>
    %c0_15 = arith.constant 0 : index
    %c0_16 = arith.constant 0 : index
    %20 = vector.load %arg8[%c0_15, %c0_16] : memref<1x4xf32, #tpu.memory_space<vmem>>, vector<1x4xf32>
    %21 = vector.broadcast %20 : vector<1x4xf32> to vector<8x4xf32>
    %22 = arith.addf %19, %21 : vector<8x4xf32>
    %23 = math.tanh %22 : vector<8x4xf32>
    %c0_17 = arith.constant 0 : index
    %c0_18 = arith.constant 0 : index
    %24 = memref.load %arg1[%c0_17, %c0_18] : memref<1x1xf32, #tpu.memory_space<smem>>
    %25 = vector.broadcast %24 : f32 to vector<8x4xf32>
    %26 = arith.mulf %23, %25 : vector<8x4xf32>
    %c0_19 = arith.constant 0 : index
    %c0_20 = arith.constant 0 : index
    %27 = vector.load %arg9[%c0_19, %c0_20] : memref<8x4xf32, #tpu.memory_space<vmem>>, vector<8x4xf32>
    tpu.vector_store %arg9[%c0_19, %c0_20], %26 {strides = array<i32>} : memref<8x4xf32, #tpu.memory_space<vmem>>, vector<8x4xf32>,
    return
  }
  func.func @transform_0(%arg0: i32) -> (i32, i32) {
    %c0_i32 = arith.constant 0 : i32
    %c0_i32_0 = arith.constant 0 : i32
    %c0_i32_1 = arith.constant 0 : i32
    return %c0_i32, %c0_i32_0 : i32, i32
  }
  func.func @transform_1(%arg0: i32) -> (i32, i32) {
    %c0_i32 = arith.constant 0 : i32
    %c0_i32_0 = arith.constant 0 : i32
    return %arg0, %c0_i32 : i32, i32
  }
  func.func @transform_2(%arg0: i32) -> (i32, i32) {
    %c0_i32 = arith.constant 0 : i32
    %c0_i32_0 = arith.constant 0 : i32
    %c0_i32_1 = arith.constant 0 : i32
    return %c0_i32, %c0_i32_0 : i32, i32
  }
  func.func @transform_3(%arg0: i32) -> (i32, i32) {
    %c0_i32 = arith.constant 0 : i32
    %c0_i32_0 = arith.constant 0 : i32
    %c0_i32_1 = arith.constant 0 : i32
    return %c0_i32, %c0_i32_0 : i32, i32
  }
  func.func @transform_4(%arg0: i32) -> (i32, i32) {
    %c0_i32 = arith.constant 0 : i32
    %c0_i32_0 = arith.constant 0 : i32
    %c0_i32_1 = arith.constant 0 : i32
    return %c0_i32, %c0_i32_0 : i32, i32
  }
  func.func @transform_5(%arg0: i32) -> (i32, i32) {
    %c0_i32 = arith.constant 0 : i32
    %c0_i32_0 = arith.constant 0 : i32
    %c0_i32_1 = arith.constant 0 : i32
    return %c0_i32, %c0_i32_0 : i32, i32
  }
  func.func @transform_6(%arg0: i32) -> (i32, i32) {
    %c0_i32 = arith.constant 0 : i32
    %c0_i32_0 = arith.constant 0 : i32
    %c0_i32_1 = arith.constant 0 : i32
    return %c0_i32, %c0_i32_0 : i32, i32
  }
  func.func @transform_7(%arg0: i32) -> (i32, i32) {
    %c0_i32 = arith.constant 0 : i32
    %c0_i32_0 = arith.constant 0 : i32
    %c0_i32_1 = arith.constant 0 : i32
    return %c0_i32, %c0_i32_0 : i32, i32
  }
  func.func @transform_8(%arg0: i32) -> (i32, i32) {
    %c0_i32 = arith.constant 0 : i32
    %c0_i32_0 = arith.constant 0 : i32
    return %arg0, %c0_i32 : i32, i32
  }
}

</mosaic_0001>

<llo_original>
// kernel: tpu_custom_call.1
$region0: #{tpu_custom_call.1}
  #allocation0 [shape = 'u32[]', space=smem, size = 0x4, offset = 0x4, fixed_abs, tag = 'smem constant byte address 0x4 - core index']
  #allocation1 [shape = 'u32[72,128]{1,0:T(1,128)}', space=vmem, size = 0x9000, scoped, tag = 'internal scratch']
  #allocation2 [shape = 'f32[1,1]{1,0:T(1,128)S(6)}', space=smem, size = 0x200, scoped, tag = 'scoped memory for tpu_custom_call.1']
  %s0 = inlined_call_operand.<no memory space> [shape: f32[1,1], index: 0, kind: input, shape index: {}]
  %s1 = inlined_call_operand.vmem [shape: f32[8,32], index: 1, kind: input, shape index: {}]
  %s2 = inlined_call_operand.vmem [shape: bf16[32,256], index: 2, kind: input, shape index: {}]
  %s3 = inlined_call_operand.vmem [shape: f32[1,256], index: 3, kind: input, shape index: {}]
  %s4 = inlined_call_operand.hbm [shape: bf16[256,256], index: 4, kind: input, shape index: {}]
  %s5 = inlined_call_operand.vmem [shape: f32[1,256], index: 5, kind: input, shape index: {}]
  %s6 = inlined_call_operand.vmem [shape: bf16[256,4], index: 6, kind: input, shape index: {}]
  %s7 = inlined_call_operand.vmem [shape: f32[1,4], index: 7, kind: input, shape index: {}]
  %s8 = inlined_call_operand.vmem [shape: f32[8,4], index: 8, kind: output, shape index: {}]
  %s9 = sld [smem:[#allocation0]]
  $region46: #{tpu_custom_call.1} parent=0
    _
  %s11 = ssub.s32 1, %s9
  %s12 = scalar_select 0, %s11, %s9
  %13 = sst [smem:[#allocation2]] %s0
  $region1: #{tpu_custom_call.1} parent=0
    #allocation3 [shape = 'u8[131072]{0}', space=vmem, size = 0x20000, scoped, tag = 'input window, operand 4, single buffered']
    #allocation4 [shape = 's32[1]{0}', space=sflag, size = 0x4, scoped, tag = 'scoped memory for tpu_custom_call.1']
    %14 = vsyncpa [#allocation4], 0
    // Predicated region
    $region2: #{tpu_custom_call.1} parent=1 // pred_check
      _
    $region3: #{tpu_custom_call.1} parent=1 // pred_check_branch
      %16 = sbr.rel (0) target = $region5
    $region4: #{tpu_custom_call.1} parent=1 // pred_region
      _
    $region5: #{tpu_custom_call.1} parent=1 // pred_fallthru
      _
    // Predicated region
    $region6: #{tpu_custom_call.1} parent=1 // pred_check
      _
    $region7: #{tpu_custom_call.1} parent=1 // pred_check_branch
      %18 = sbr.rel (0) target = $region9
    $region8: #{tpu_custom_call.1} parent=1 // pred_region
      _
    $region9: #{tpu_custom_call.1} parent=1 // pred_fallthru
      _
    // Predicated region
    $region10: #{tpu_custom_call.1} parent=1 // pred_check
      _
    $region11: #{tpu_custom_call.1} parent=1 // pred_check_branch
      %20 = sbr.rel (0) target = $region13
    $region12: #{tpu_custom_call.1} parent=1 // pred_region
      _
    $region13: #{tpu_custom_call.1} parent=1 // pred_fallthru
      _
    // Predicated region
    $region14: #{tpu_custom_call.1} parent=1 // pred_check
      _
    $region15: #{tpu_custom_call.1} parent=1 // pred_check_branch
      %22 = sbr.rel (0) target = $region17
    $region16: #{tpu_custom_call.1} parent=1 // pred_region
      _
    $region17: #{tpu_custom_call.1} parent=1 // pred_fallthru
      _
    // Predicated region
    $region18: #{tpu_custom_call.1} parent=1 // pred_check
      _
    $region19: #{tpu_custom_call.1} parent=1 // pred_check_branch
      %24 = sbr.rel (0) target = $region21
    $region20: #{tpu_custom_call.1} parent=1 // pred_region
      %26 = vsyncadd [#allocation4], 0
      %s27 = sshll.u32 %s4, 4
      %s28 = int_to_ptr.hbm [resolvable:$true] %s27
      %s29 = sshll.u32 [#allocation3], 4
      %s30 = int_to_ptr.vmem [resolvable:$true] %s29
      %35 = dma.hbm_to_vmem [thread:$0]  %s28, 4096, %s30, [#allocation4], 128, 128, 8
    $region21: #{tpu_custom_call.1} parent=1 // pred_fallthru
      _
    // Predicated region
    $region22: #{tpu_custom_call.1} parent=1 // pred_check
      _
    $region23: #{tpu_custom_call.1} parent=1 // pred_check_branch
      %37 = sbr.rel (0) target = $region25
    $region24: #{tpu_custom_call.1} parent=1 // pred_region
      _
    $region25: #{tpu_custom_call.1} parent=1 // pred_fallthru
      _
    // Predicated region
    $region26: #{tpu_custom_call.1} parent=1 // pred_check
      _
    $region27: #{tpu_custom_call.1} parent=1 // pred_check_branch
      %39 = sbr.rel (0) target = $region29
    $region28: #{tpu_custom_call.1} parent=1 // pred_region
      _
    $region29: #{tpu_custom_call.1} parent=1 // pred_fallthru
      _
    // Predicated region
    $region30: #{tpu_custom_call.1} parent=1 // pred_check
      _
    $region31: #{tpu_custom_call.1} parent=1 // pred_check_branch
      %41 = sbr.rel (0) target = $region33
    $region32: #{tpu_custom_call.1} parent=1 // pred_region
      _
    $region33: #{tpu_custom_call.1} parent=1 // pred_fallthru
      _
    // Predicated region
    $region34: #{tpu_custom_call.1} parent=1 // pred_check
      _
    $region35: #{tpu_custom_call.1} parent=1 // pred_check_branch
      %43 = sbr.rel (0) target = $region37
    $region36: #{tpu_custom_call.1} parent=1 // pred_region
      %45 = dma.done [#allocation4], 4096
    $region37: #{tpu_custom_call.1} parent=1 // pred_fallthru
      _
    %v47 = vld [vmem:[%s1] sm:$0xff]
    %v48 = vpack.c.bf16 %v47, %v47
    %v49 = vld [vmem:[%s2] sm:$0xff]
    %v50 = vld [vmem:[%s2 + $0x8] sm:$0xff]
    %v51 = vld [vmem:[%s2 + $0x10] sm:$0xff]
    %v52 = vld [vmem:[%s2 + $0x18] sm:$0xff]
    %v53 = vld [vmem:[%s3] sm:$0x3]
    %v55 = vperm.slane %v53, 0
    %v56 = vperm.slane %v53, 1
    %v63 = vunpack.c.l.b16 %v49
    %v64 = vunpack.c.h.b16 %v49
    %v65 = vunpack.c.l.b16 %v50
    %v66 = vunpack.c.h.b16 %v50
    %v67 = vunpack.c.l.b16 %v51
    %v68 = vunpack.c.h.b16 %v51
    %v69 = vunpack.c.l.b16 %v52
    %v70 = vunpack.c.h.b16 %v52
    %v71 = vpack.c.b16 %v65, %v63
    %v72 = vpack.c.b16 %v66, %v64
    %v73 = vpack.c.b16 %v69, %v67
    %v74 = vpack.c.b16 %v70, %v68
    %vm79 = vcmask 261120
    %v81 = vsel %vm79, %v48, 0
    %83 = vmatpush.bf16.msra.mxu0 0
    %84 = vmatpush.bf16.msra.mxu0 0
    %85 = vmatpush.bf16.msra.mxu0 0
    %86 = vmatpush.bf16.msra.mxu0 0
    %87 = vmatpush.bf16.msra.mxu0 0
    %88 = vmatpush.bf16.msra.mxu0 0
    %89 = vmatpush.bf16.msra.mxu0 %v73
    %90 = vmatpush.bf16.msra.mxu0 %v71
    %91 = vmatmul.bf16.gmra.mxu0 %v81
    %v92 = vpop.f32.mrf.mxu0
    %v93 = vadd.f32 %v55, %v92
    %v94 = vpop.f32.mrf.mxu0
    %95 = vdwg.mxu0
    %96 = vmatpush.bf16.msra.mxu0 0
    %97 = vmatpush.bf16.msra.mxu0 0
    %98 = vmatpush.bf16.msra.mxu0 0
    %99 = vmatpush.bf16.msra.mxu0 0
    %100 = vmatpush.bf16.msra.mxu0 0
    %101 = vmatpush.bf16.msra.mxu0 0
    %102 = vmatpush.bf16.msra.mxu0 %v74
    %103 = vmatpush.bf16.msra.mxu0 %v72
    %104 = vmatmul.bf16.gmra.mxu0 %v81
    %v105 = vpop.f32.mrf.mxu0
    %v106 = vadd.f32 %v56, %v105
    %v107 = vpop.f32.mrf.mxu0
    %108 = vdwg.mxu0
    %v109 = vmax.f32 %v93, 0.0
    %v110 = vmax.f32 %v106, 0.0
    %v111 = vpack.c.bf16 %v109, %v109
    %v112 = vpack.c.bf16 %v110, %v110
    %v113 = vld [vmem:[#allocation3] sm:$0xff]
    %v114 = vld [vmem:[#allocation3 + $0x8] sm:$0xff]
    %v115 = vld [vmem:[#allocation3 + $0x10] sm:$0xff]
    %v116 = vld [vmem:[#allocation3 + $0x18] sm:$0xff]
    %v117 = vld [vmem:[#allocation3 + $0x20] sm:$0xff]
    %v118 = vld [vmem:[#allocation3 + $0x28] sm:$0xff]
    %v119 = vld [vmem:[#allocation3 + $0x30] sm:$0xff]
    %v120 = vld [vmem:[#allocation3 + $0x38] sm:$0xff]
    %v121 = vld [vmem:[#allocation3 + $0x40] sm:$0xff]
    %v122 = vld [vmem:[#allocation3 + $0x48] sm:$0xff]
    %v123 = vld [vmem:[#allocation3 + $0x50] sm:$0xff]
    %v124 = vld [vmem:[#allocation3 + $0x58] sm:$0xff]
    %v125 = vld [vmem:[#allocation3 + $0x60] sm:$0xff]
    %v126 = vld [vmem:[#allocation3 + $0x68] sm:$0xff]
    %v127 = vld [vmem:[#allocation3 + $0x70] sm:$0xff]
    %v128 = vld [vmem:[#allocation3 + $0x78] sm:$0xff]
    %v129 = vld [vmem:[#allocation3 + $0x80] sm:$0xff]
    %v130 = vld [vmem:[#allocation3 + $0x88] sm:$0xff]
    %v131 = vld [vmem:[#allocation3 + $0x90] sm:$0xff]
    %v132 = vld [vmem:[#allocation3 + $0x98] sm:$0xff]
    %v133 = vld [vmem:[#allocation3 + $0xa0] sm:$0xff]
    %v134 = vld [vmem:[#allocation3 + $0xa8] sm:$0xff]
    %v135 = vld [vmem:[#allocation3 + $0xb0] sm:$0xff]
    %v136 = vld [vmem:[#allocation3 + $0xb8] sm:$0xff]
    %v137 = vld [vmem:[#allocation3 + $0xc0] sm:$0xff]
    %v138 = vld [vmem:[#allocation3 + $0xc8] sm:$0xff]
    %v139 = vld [vmem:[#allocation3 + $0xd0] sm:$0xff]
    %v140 = vld [vmem:[#allocation3 + $0xd8] sm:$0xff]
    %v141 = vld [vmem:[#allocation3 + $0xe0] sm:$0xff]
    %v142 = vld [vmem:[#allocation3 + $0xe8] sm:$0xff]
    %v143 = vld [vmem:[#allocation3 + $0xf0] sm:$0xff]
    %v144 = vld [vmem:[#allocation3 + $0xf8] sm:$0xff]
    %v145 = vld [vmem:[%s5] sm:$0x3]
    %v147 = vperm.slane %v145, 0
    %v148 = vperm.slane %v145, 1
    %v183 = vunpack.c.l.b16 %v113
    %v184 = vunpack.c.h.b16 %v113
    %v185 = vunpack.c.l.b16 %v114
    %v186 = vunpack.c.h.b16 %v114
    %v187 = vunpack.c.l.b16 %v115
    %v188 = vunpack.c.h.b16 %v115
    %v189 = vunpack.c.l.b16 %v116
    %v190 = vunpack.c.h.b16 %v116
    %v191 = vunpack.c.l.b16 %v117
    %v192 = vunpack.c.h.b16 %v117
    %v193 = vunpack.c.l.b16 %v118
    %v194 = vunpack.c.h.b16 %v118
    %v195 = vunpack.c.l.b16 %v119
    %v196 = vunpack.c.h.b16 %v119
    %v197 = vunpack.c.l.b16 %v120
    %v198 = vunpack.c.h.b16 %v120
    %v199 = vunpack.c.l.b16 %v121
    %v200 = vunpack.c.h.b16 %v121
    %v201 = vunpack.c.l.b16 %v122
    %v202 = vunpack.c.h.b16 %v122
    %v203 = vunpack.c.l.b16 %v123
    %v204 = vunpack.c.h.b16 %v123
    %v205 = vunpack.c.l.b16 %v124
    %v206 = vunpack.c.h.b16 %v124
    %v207 = vunpack.c.l.b16 %v125
    %v208 = vunpack.c.h.b16 %v125
    %v209 = vunpack.c.l.b16 %v126
    %v210 = vunpack.c.h.b16 %v126
    %v211 = vunpack.c.l.b16 %v127
    %v212 = vunpack.c.h.b16 %v127
    %v213 = vunpack.c.l.b16 %v128
    %v214 = vunpack.c.h.b16 %v128
    %v215 = vunpack.c.l.b16 %v129
    %v216 = vunpack.c.h.b16 %v129
    %v217 = vunpack.c.l.b16 %v130
    %v218 = vunpack.c.h.b16 %v130
    %v219 = vunpack.c.l.b16 %v131
    %v220 = vunpack.c.h.b16 %v131
    %v221 = vunpack.c.l.b16 %v132
    %v222 = vunpack.c.h.b16 %v132
    %v223 = vunpack.c.l.b16 %v133
    %v224 = vunpack.c.h.b16 %v133
    %v225 = vunpack.c.l.b16 %v134
    %v226 = vunpack.c.h.b16 %v134
    %v227 = vunpack.c.l.b16 %v135
    %v228 = vunpack.c.h.b16 %v135
    %v229 = vunpack.c.l.b16 %v136
    %v230 = vunpack.c.h.b16 %v136
    %v231 = vunpack.c.l.b16 %v137
    %v232 = vunpack.c.h.b16 %v137
    %v233 = vunpack.c.l.b16 %v138
    %v234 = vunpack.c.h.b16 %v138
    %v235 = vunpack.c.l.b16 %v139
    %v236 = vunpack.c.h.b16 %v139
    %v237 = vunpack.c.l.b16 %v140
    %v238 = vunpack.c.h.b16 %v140
    %v239 = vunpack.c.l.b16 %v141
    %v240 = vunpack.c.h.b16 %v141
    %v241 = vunpack.c.l.b16 %v142
    %v242 = vunpack.c.h.b16 %v142
    %v243 = vunpack.c.l.b16 %v143
    %v244 = vunpack.c.h.b16 %v143
    %v245 = vunpack.c.l.b16 %v144
    %v246 = vunpack.c.h.b16 %v144
    %v247 = vpack.c.b16 %v185, %v183
    %v248 = vpack.c.b16 %v186, %v184
    %v249 = vpack.c.b16 %v189, %v187
    %v250 = vpack.c.b16 %v190, %v188
    %v251 = vpack.c.b16 %v193, %v191
    %v252 = vpack.c.b16 %v194, %v192
    %v253 = vpack.c.b16 %v197, %v195
    %v254 = vpack.c.b16 %v198, %v196
    %v255 = vpack.c.b16 %v201, %v199
    %v256 = vpack.c.b16 %v202, %v200
    %v257 = vpack.c.b16 %v205, %v203
    %v258 = vpack.c.b16 %v206, %v204
    %v259 = vpack.c.b16 %v209, %v207
    %v260 = vpack.c.b16 %v210, %v208
    %v261 = vpack.c.b16 %v213, %v211
    %v262 = vpack.c.b16 %v214, %v212
    %v263 = vpack.c.b16 %v217, %v215
    %v264 = vpack.c.b16 %v218, %v216
    %v265 = vpack.c.b16 %v221, %v219
    %v266 = vpack.c.b16 %v222, %v220
    %v267 = vpack.c.b16 %v225, %v223
    %v268 = vpack.c.b16 %v226, %v224
    %v269 = vpack.c.b16 %v229, %v227
    %v270 = vpack.c.b16 %v230, %v228
    %v271 = vpack.c.b16 %v233, %v231
    %v272 = vpack.c.b16 %v234, %v232
    %v273 = vpack.c.b16 %v237, %v235
    %v274 = vpack.c.b16 %v238, %v236
    %v275 = vpack.c.b16 %v241, %v239
    %v276 = vpack.c.b16 %v242, %v240
    %v277 = vpack.c.b16 %v245, %v243
    %v278 = vpack.c.b16 %v246, %v244
    %311 = vmatpush.bf16.msra.mxu0 %v261
    %312 = vmatpush.bf16.msra.mxu0 %v259
    %313 = vmatpush.bf16.msra.mxu0 %v257
    %314 = vmatpush.bf16.msra.mxu0 %v255
    %315 = vmatpush.bf16.msra.mxu0 %v253
    %316 = vmatpush.bf16.msra.mxu0 %v251
    %317 = vmatpush.bf16.msra.mxu0 %v249
    %318 = vmatpush.bf16.msra.mxu0 %v247
    %319 = vmatmul.bf16.gmra.mxu0 %v111
    %v320 = vpop.f32.mrf.mxu0
    %v321 = vadd.f32 %v147, %v320
    %v322 = vpop.f32.mrf.mxu0
    %323 = vdwg.mxu0
    %324 = vmatpush.bf16.msra.mxu0 %v277
    %325 = vmatpush.bf16.msra.mxu0 %v275
    %326 = vmatpush.bf16.msra.mxu0 %v273
    %327 = vmatpush.bf16.msra.mxu0 %v271
    %328 = vmatpush.bf16.msra.mxu0 %v269
    %329 = vmatpush.bf16.msra.mxu0 %v267
    %330 = vmatpush.bf16.msra.mxu0 %v265
    %331 = vmatpush.bf16.msra.mxu0 %v263
    %332 = vmatmul.bf16.gmra.mxu0 %v112
    %v333 = vpop.f32.mrf.mxu0
    %v334 = vadd.f32 %v321, %v333
    %v335 = vpop.f32.mrf.mxu0
    %336 = vdwg.mxu0
    %337 = vmatpush.bf16.msra.mxu0 %v262
    %338 = vmatpush.bf16.msra.mxu0 %v260
    %339 = vmatpush.bf16.msra.mxu0 %v258
    %340 = vmatpush.bf16.msra.mxu0 %v256
    %341 = vmatpush.bf16.msra.mxu0 %v254
    %342 = vmatpush.bf16.msra.mxu0 %v252
    %343 = vmatpush.bf16.msra.mxu0 %v250
    %344 = vmatpush.bf16.msra.mxu0 %v248
    %345 = vmatmul.bf16.gmra.mxu0 %v111
    %v346 = vpop.f32.mrf.mxu0
    %v347 = vadd.f32 %v148, %v346
    %v348 = vpop.f32.mrf.mxu0
    %349 = vdwg.mxu0
    %350 = vmatpush.bf16.msra.mxu0 %v278
    %351 = vmatpush.bf16.msra.mxu0 %v276
    %352 = vmatpush.bf16.msra.mxu0 %v274
    %353 = vmatpush.bf16.msra.mxu0 %v272
    %354 = vmatpush.bf16.msra.mxu0 %v270
    %355 = vmatpush.bf16.msra.mxu0 %v268
    %356 = vmatpush.bf16.msra.mxu0 %v266
    %357 = vmatpush.bf16.msra.mxu0 %v264
    %358 = vmatmul.bf16.gmra.mxu0 %v112
    %v359 = vpop.f32.mrf.mxu0
    %v360 = vadd.f32 %v347, %v359
    %v361 = vpop.f32.mrf.mxu0
    %362 = vdwg.mxu0
    %v363 = vmax.f32 %v334, 0.0
    %v364 = vmax.f32 %v360, 0.0
    %v365 = vpack.c.bf16 %v363, %v363
    %v366 = vpack.c.bf16 %v364, %v364
    %v367 = vld [vmem:[%s6] sm:$0xf]
    %v368 = vld [vmem:[%s6 + $0x4] sm:$0xf]
    %v369 = vld [vmem:[%s6 + $0x8] sm:$0xf]
    %v370 = vld [vmem:[%s6 + $0xc] sm:$0xf]
    %v371 = vld [vmem:[%s6 + $0x10] sm:$0xf]
    %v372 = vld [vmem:[%s6 + $0x14] sm:$0xf]
    %v373 = vld [vmem:[%s6 + $0x18] sm:$0xf]
    %v374 = vld [vmem:[%s6 + $0x1c] sm:$0xf]
    %v375 = vld [vmem:[%s6 + $0x20] sm:$0xf]
    %v376 = vld [vmem:[%s6 + $0x24] sm:$0xf]
    %v377 = vld [vmem:[%s6 + $0x28] sm:$0xf]
    %v378 = vld [vmem:[%s6 + $0x2c] sm:$0xf]
    %v379 = vld [vmem:[%s6 + $0x30] sm:$0xf]
    %v380 = vld [vmem:[%s6 + $0x34] sm:$0xf]
    %v381 = vld [vmem:[%s6 + $0x38] sm:$0xf]
    %v382 = vld [vmem:[%s6 + $0x3c] sm:$0xf]
    %v383 = vld [vmem:[%s6 + $0x40] sm:$0xf]
    %v384 = vld [vmem:[%s6 + $0x44] sm:$0xf]
    %v385 = vld [vmem:[%s6 + $0x48] sm:$0xf]
    %v386 = vld [vmem:[%s6 + $0x4c] sm:$0xf]
    %v387 = vld [vmem:[%s6 + $0x50] sm:$0xf]
    %v388 = vld [vmem:[%s6 + $0x54] sm:$0xf]
    %v389 = vld [vmem:[%s6 + $0x58] sm:$0xf]
    %v390 = vld [vmem:[%s6 + $0x5c] sm:$0xf]
    %v391 = vld [vmem:[%s6 + $0x60] sm:$0xf]
    %v392 = vld [vmem:[%s6 + $0x64] sm:$0xf]
    %v393 = vld [vmem:[%s6 + $0x68] sm:$0xf]
    %v394 = vld [vmem:[%s6 + $0x6c] sm:$0xf]
    %v395 = vld [vmem:[%s6 + $0x70] sm:$0xf]
    %v396 = vld [vmem:[%s6 + $0x74] sm:$0xf]
    %v397 = vld [vmem:[%s6 + $0x78] sm:$0xf]
    %v398 = vld [vmem:[%s6 + $0x7c] sm:$0xf]
    %v399 = vld [vmem:[%s7] sm:$0x1]
    %v401 = vperm.slane %v399, 0
    %v435 = vunpack.c.l.b16 %v367
    %v436 = vunpack.c.l.b16 %v368
    %v437 = vunpack.c.l.b16 %v369
    %v438 = vunpack.c.l.b16 %v370
    %v439 = vunpack.c.l.b16 %v371
    %v440 = vunpack.c.l.b16 %v372
    %v441 = vunpack.c.l.b16 %v373
    %v442 = vunpack.c.l.b16 %v374
    %v443 = vunpack.c.l.b16 %v375
    %v444 = vunpack.c.l.b16 %v376
    %v445 = vunpack.c.l.b16 %v377
    %v446 = vunpack.c.l.b16 %v378
    %v447 = vunpack.c.l.b16 %v379
    %v448 = vunpack.c.l.b16 %v380
    %v449 = vunpack.c.l.b16 %v381
    %v450 = vunpack.c.l.b16 %v382
    %v451 = vunpack.c.l.b16 %v383
    %v452 = vunpack.c.l.b16 %v384
    %v453 = vunpack.c.l.b16 %v385
    %v454 = vunpack.c.l.b16 %v386
    %v455 = vunpack.c.l.b16 %v387
    %v456 = vunpack.c.l.b16 %v388
    %v457 = vunpack.c.l.b16 %v389
    %v458 = vunpack.c.l.b16 %v390
    %v459 = vunpack.c.l.b16 %v391
    %v460 = vunpack.c.l.b16 %v392
    %v461 = vunpack.c.l.b16 %v393
    %v462 = vunpack.c.l.b16 %v394
    %v463 = vunpack.c.l.b16 %v395
    %v464 = vunpack.c.l.b16 %v396
    %v465 = vunpack.c.l.b16 %v397
    %v466 = vunpack.c.l.b16 %v398
    %v467 = vpack.c.b16 %v436, %v435
    %v468 = vpack.c.b16 %v438, %v437
    %v469 = vpack.c.b16 %v440, %v439
    %v470 = vpack.c.b16 %v442, %v441
    %v471 = vpack.c.b16 %v444, %v443
    %v472 = vpack.c.b16 %v446, %v445
    %v473 = vpack.c.b16 %v448, %v447
    %v474 = vpack.c.b16 %v450, %v449
    %v475 = vpack.c.b16 %v452, %v451
    %v476 = vpack.c.b16 %v454, %v453
    %v477 = vpack.c.b16 %v456, %v455
    %v478 = vpack.c.b16 %v458, %v457
    %v479 = vpack.c.b16 %v460, %v459
    %v480 = vpack.c.b16 %v462, %v461
    %v481 = vpack.c.b16 %v464, %v463
    %v482 = vpack.c.b16 %v466, %v465
    %499 = vmatpush.bf16.msra.mxu0 %v474
    %500 = vmatpush.bf16.msra.mxu0 %v473
    %501 = vmatpush.bf16.msra.mxu0 %v472
    %502 = vmatpush.bf16.msra.mxu0 %v471
    %503 = vmatpush.bf16.msra.mxu0 %v470
    %504 = vmatpush.bf16.msra.mxu0 %v469
    %505 = vmatpush.bf16.msra.mxu0 %v468
    %506 = vmatpush.bf16.msra.mxu0 %v467
    %507 = vmatmul.bf16.gmra.mxu0 %v365
    %v508 = vpop.f32.mrf.mxu0
    %v509 = vadd.f32 %v401, %v508
    %v510 = vpop.f32.mrf.mxu0
    %511 = vdwg.mxu0
    %512 = vmatpush.bf16.msra.mxu0 %v482
    %513 = vmatpush.bf16.msra.mxu0 %v481
    %514 = vmatpush.bf16.msra.mxu0 %v480
    %515 = vmatpush.bf16.msra.mxu0 %v479
    %516 = vmatpush.bf16.msra.mxu0 %v478
    %517 = vmatpush.bf16.msra.mxu0 %v477
    %518 = vmatpush.bf16.msra.mxu0 %v476
    %519 = vmatpush.bf16.msra.mxu0 %v475
    %520 = vmatmul.bf16.gmra.mxu0 %v366
    %v521 = vpop.f32.mrf.mxu0
    %v522 = vadd.f32 %v509, %v521
    %v523 = vpop.f32.mrf.mxu0
    %524 = vdwg.mxu0
    %v525 = vtanh.pop %v522
    %s526 = sld [smem:[#allocation2]]
    %v527 = vstv %s526
    %v528 = vmul.f32 %v525, %v527
    %vm529 = vcmask 31744
    %530 = vst.msk [vmem:[%s8] sm:$0xff] %vm529, %v528
    // Predicated region
    $region38: #{tpu_custom_call.1} parent=1 // pred_check
      _
    $region39: #{tpu_custom_call.1} parent=1 // pred_check_branch
      %532 = sbr.rel (0) target = $region41
    $region40: #{tpu_custom_call.1} parent=1 // pred_region
      _
    $region41: #{tpu_custom_call.1} parent=1 // pred_fallthru
      _
    // Predicated region
    $region42: #{tpu_custom_call.1} parent=1 // pred_check
      _
    $region43: #{tpu_custom_call.1} parent=1 // pred_check_branch
      %534 = sbr.rel (0) target = $region45
    $region44: #{tpu_custom_call.1} parent=1 // pred_region
      _
    $region45: #{tpu_custom_call.1} parent=1 // pred_fallthru
      _
    %535 = vsyncpa [#allocation4], 1

</llo_original>
